<compile_context>
chip_gen: v5e
topology: v5e:2x2
jax: 0.10.0
libtpu: 0.0.40
codegen_flags: <defaults>
</compile_context>

<pallas_src>
import functools

import jax
import jax.numpy as jnp
from jax.experimental import pallas as pl
from jax.experimental.pallas import tpu as pltpu

N_MFCC = 13
IN_DIM = 2 * N_MFCC      # 26
H1 = 64
H2 = 32
NUM_CLASSES = 4

MAX_TILE_B = 2048        # folded rows per tile (= FOLD * that many raw rows)


def _tpu_config():
    """Return (fold, target_grid_steps) for this TPU generation.

    fold=4 keeps K'/N' within one 256x256 MXU pass (v6e/v7x); fold=2 for
    128x128-MXU parts (v2..v5e).  target_grid_steps=1 on single-TC chips,
    2 on v7x (2 TensorCores/chip)."""
    try:
        kind = jax.devices()[0].device_kind.lower()
    except Exception:
        return 4, 2
    if any(f"v{g}" in kind for g in (2, 3, 4, 5)):
        return 2, 1          # 128x128 MXU, single TensorCore
    if "7" in kind:
        return 4, 2          # v7x: 256x256 MXU, 2 TensorCores
    return 4, 1              # v6e and default


FOLD, TARGET_GRID_STEPS = _tpu_config()


def _mlp_kernel(x_ref, w1_ref, b1_ref, w2_ref, b2_ref, w3_ref, b3_ref, o_ref):
    # x_ref: (tile_b, FOLD*IN_DIM) folded batch tile. Weights/biases resident.
    x = x_ref[...]
    h1 = jnp.dot(x, w1_ref[...], preferred_element_type=jnp.float32) + b1_ref[...]
    h1 = jnp.maximum(h1, 0.0)                                   # ReLU (f32)
    h2 = jnp.dot(h1.astype(w2_ref.dtype), w2_ref[...],
                 preferred_element_type=jnp.float32) + b2_ref[...]
    h2 = jnp.maximum(h2, 0.0)                                   # ReLU (f32)
    out = jnp.dot(h2.astype(w3_ref.dtype), w3_ref[...],
                  preferred_element_type=jnp.float32) + b3_ref[...]
    o_ref[...] = out.astype(o_ref.dtype)


def _choose_tile_b(folded_rows, target_steps):
    """Biggest tile that fits (amortize ~0.35us/step), split only enough to
    feed every TensorCore; multiple of 16 (bf16 sublane packing)."""
    t = max(16, pl.cdiv(folded_rows, target_steps))
    t = pl.cdiv(t, 16) * 16
    return min(MAX_TILE_B, t)


@functools.partial(jax.jit, static_argnames=("fold", "target_steps"))
def _mlp_forward_folded(x, w1f, b1f, w2f, b2f, w3f, b3f, *, fold, target_steps):
    B = x.shape[0]
    pad = (-B) % fold
    if pad:                                   # at most fold-1 rows, usually 0
        x = jnp.pad(x, ((0, pad), (0, 0)))
    bf = (B + pad) // fold
    xf = x.reshape(bf, fold * IN_DIM)         # free row-major reshape

    in_f = fold * IN_DIM
    h1_f = fold * H1
    h2_f = fold * H2
    out_f = fold * NUM_CLASSES

    tile_b = _choose_tile_b(bf, target_steps)
    grid = (pl.cdiv(bf, tile_b),)             # ragged last block masked by Pallas

    outf = pl.pallas_call(
        _mlp_kernel,
        out_shape=jax.ShapeDtypeStruct((bf, out_f), jnp.float32),
        grid=grid,
        in_specs=[
            pl.BlockSpec((tile_b, in_f), lambda i: (i, 0)),   # folded x tile
            pl.BlockSpec((in_f, h1_f), lambda i: (0, 0)),     # W1' (resident)
            pl.BlockSpec((1, h1_f), lambda i: (0, 0)),        # b1'
            pl.BlockSpec((h1_f, h2_f), lambda i: (0, 0)),     # W2'
            pl.BlockSpec((1, h2_f), lambda i: (0, 0)),        # b2'
            pl.BlockSpec((h2_f, out_f), lambda i: (0, 0)),    # W3'
            pl.BlockSpec((1, out_f), lambda i: (0, 0)),       # b3'
        ],
        out_specs=pl.BlockSpec((tile_b, out_f), lambda i: (i, 0)),
        compiler_params=pltpu.CompilerParams(
            dimension_semantics=("parallel",)),
    )(xf, w1f, b1f, w2f, b2f, w3f, b3f)

    out = outf.reshape((B + pad), NUM_CLASSES)  # free: identical row-major bytes
    return out[:B] if pad else out


def mlp_forward(x, folded_params, *, fold=FOLD, target_steps=TARGET_GRID_STEPS):
    return _mlp_forward_folded(x, *folded_params, fold=fold,
                               target_steps=target_steps)


def init_params(key, weight_dtype=jnp.bfloat16):
    """Deterministic init matching nn.Linear's U(-1/sqrt(fan_in), 1/sqrt(fan_in)).
    Weights stored [in, out] (transposed from PyTorch) in bf16; biases f32."""
    def linear(key, fan_in, fan_out):
        kw, kb = jax.random.split(key)
        bound = 1.0 / jnp.sqrt(fan_in)
        w = jax.random.uniform(kw, (fan_in, fan_out), jnp.float32, -bound, bound)
        b = jax.random.uniform(kb, (1, fan_out), jnp.float32, -bound, bound)
        return w.astype(weight_dtype), b

    k1, k2, k3 = jax.random.split(key, 3)
    w1, b1 = linear(k1, IN_DIM, H1)
    w2, b2 = linear(k2, H1, H2)
    w3, b3 = linear(k3, H2, NUM_CLASSES)
    return w1, b1, w2, b2, w3, b3


def fold_params(params, fold):
    """Block-diagonal weight replicas + tiled biases so `fold` batch rows ride
    a single MXU pass per layer. Exact math: off-diagonal blocks are zero."""
    w1, b1, w2, b2, w3, b3 = params

    def block_diag(w):
        fin, fout = w.shape
        out = jnp.zeros((fold * fin, fold * fout), w.dtype)
        for i in range(fold):
            out = out.at[i * fin:(i + 1) * fin, i * fout:(i + 1) * fout].set(w)
        return out

    def tile_bias(b):
        return jnp.tile(b, (1, fold))

    return (block_diag(w1), tile_bias(b1),
            block_diag(w2), tile_bias(b2),
            block_diag(w3), tile_bias(b3))


def reference_forward(x, w1, b1, w2, b2, w3, b3):
    """Pure-JAX reference (unfolded) mirroring the kernel's mixed precision."""
    h1 = jnp.maximum(
        jnp.dot(x, w1, preferred_element_type=jnp.float32) + b1, 0.0)
    h2 = jnp.maximum(
        jnp.dot(h1.astype(w2.dtype), w2, preferred_element_type=jnp.float32) + b2, 0.0)
    return jnp.dot(h2.astype(w3.dtype), w3, preferred_element_type=jnp.float32) + b3


if __name__ == "__main__":
    key = jax.random.PRNGKey(0)
    kx, kx2, kp = jax.random.split(key, 3)
    params = init_params(kp)
    fparams = fold_params(params, FOLD)

    # Small primary check (batch=2, exercises fold padding + ragged block).
    batch = 2
    x = jax.random.normal(kx, (batch, IN_DIM), jnp.float32).astype(jnp.bfloat16)
    out = jax.block_until_ready(mlp_forward(x, fparams))
    ref = reference_forward(x, *params)
    assert out.shape == (batch, NUM_CLASSES)
    assert jnp.allclose(out, ref, atol=1e-2, rtol=1e-2), "mismatch vs reference (batch=2)"

    # Secondary check: larger batch, ragged folded-row block.
    batch2 = 300
    x2 = jax.random.normal(kx2, (batch2, IN_DIM), jnp.float32).astype(jnp.bfloat16)
    out2 = jax.block_until_ready(mlp_forward(x2, fparams))
    ref2 = reference_forward(x2, *params)
    assert out2.shape == (batch2, NUM_CLASSES)
    assert jnp.allclose(out2, ref2, atol=1e-2, rtol=1e-2), "mismatch vs reference (batch=300)"

    print("KERNEL_OK")
</pallas_src>

<mosaic_0001>
module attributes {stable_mosaic.version = 11 : i64} {
  func.func @_mlp_kernel(%arg0: i32, %arg1: memref<16x104xbf16, #tpu.memory_space<vmem>>, %arg2: memref<104x256xbf16, #tpu.memory_space<vmem>>, %arg3: memref<1x256xf32, #tpu.memory_space<vmem>>, %arg4: memref<256x128xbf16, #tpu.memory_space<vmem>>, %arg5: memref<1x128xf32, #tpu.memory_space<vmem>>, %arg6: memref<128x16xbf16, #tpu.memory_space<vmem>>, %arg7: memref<1x16xf32, #tpu.memory_space<vmem>>, %arg8: memref<16x16xf32, #tpu.memory_space<vmem>>) attributes {dimension_semantics = [#tpu.dimension_semantics<parallel>], iteration_bounds = array<i64: 1>, scalar_prefetch = 0 : i64, scratch_operands = 0 : i64, tpu.core_type = #tpu.core_type<tc>, window_params = [{transform_indices = @transform_0, window_bounds = array<i64: 16, 104>}, {pipeline_mode = #tpu.pipeline_mode<synchronous>, transform_indices = @transform_1, window_bounds = array<i64: 104, 256>}, {pipeline_mode = #tpu.pipeline_mode<synchronous>, transform_indices = @transform_2, window_bounds = array<i64: 1, 256>}, {pipeline_mode = #tpu.pipeline_mode<synchronous>, transform_indices = @transform_3, window_bounds = array<i64: 256, 128>}, {pipeline_mode = #tpu.pipeline_mode<synchronous>, transform_indices = @transform_4, window_bounds = array<i64: 1, 128>}, {pipeline_mode = #tpu.pipeline_mode<synchronous>, transform_indices = @transform_5, window_bounds = array<i64: 128, 16>}, {pipeline_mode = #tpu.pipeline_mode<synchronous>, transform_indices = @transform_6, window_bounds = array<i64: 1, 16>}, {transform_indices = @transform_7, window_bounds = array<i64: 16, 16>}]} {
    %c0 = arith.constant 0 : index
    %c0_0 = arith.constant 0 : index
    %0 = vector.load %arg1[%c0, %c0_0] : memref<16x104xbf16, #tpu.memory_space<vmem>>, vector<16x104xbf16>
    %c0_1 = arith.constant 0 : index
    %c0_2 = arith.constant 0 : index
    %1 = vector.load %arg2[%c0_1, %c0_2] : memref<104x256xbf16, #tpu.memory_space<vmem>>, vector<104x256xbf16>
    %cst = arith.constant dense<0.000000e+00> : vector<16x256xf32>
    %2 = tpu.matmul %0, %1, %cst {dimension_numbers = #tpu.dot_dimension_numbers<[1], [0], [0], [1], [0, 0, 1, 1], [], []>} : vector<16x104xbf16>, vector<104x256xbf16>, vector<16x256xf32> -> vector<16x256xf32>
    %c0_3 = arith.constant 0 : index
    %c0_4 = arith.constant 0 : index
    %3 = vector.load %arg3[%c0_3, %c0_4] : memref<1x256xf32, #tpu.memory_space<vmem>>, vector<1x256xf32>
    %4 = vector.broadcast %3 : vector<1x256xf32> to vector<16x256xf32>
    %5 = arith.addf %2, %4 : vector<16x256xf32>
    %cst_5 = arith.constant 0.000000e+00 : f32
    %6 = vector.broadcast %cst_5 : f32 to vector<16x256xf32>
    %7 = arith.maximumf %5, %6 : vector<16x256xf32>
    %8 = arith.truncf %7 : vector<16x256xf32> to vector<16x256xbf16>
    %c0_6 = arith.constant 0 : index
    %c0_7 = arith.constant 0 : index
    %9 = vector.load %arg4[%c0_6, %c0_7] : memref<256x128xbf16, #tpu.memory_space<vmem>>, vector<256x128xbf16>
    %cst_8 = arith.constant dense<0.000000e+00> : vector<16x128xf32>
    %10 = tpu.matmul %8, %9, %cst_8 {dimension_numbers = #tpu.dot_dimension_numbers<[1], [0], [0], [1], [0, 0, 1, 1], [], []>} : vector<16x256xbf16>, vector<256x128xbf16>, vector<16x128xf32> -> vector<16x128xf32>
    %c0_9 = arith.constant 0 : index
    %c0_10 = arith.constant 0 : index
    %11 = vector.load %arg5[%c0_9, %c0_10] : memref<1x128xf32, #tpu.memory_space<vmem>>, vector<1x128xf32>
    %12 = vector.broadcast %11 : vector<1x128xf32> to vector<16x128xf32>
    %13 = arith.addf %10, %12 : vector<16x128xf32>
    %cst_11 = arith.constant 0.000000e+00 : f32
    %14 = vector.broadcast %cst_11 : f32 to vector<16x128xf32>
    %15 = arith.maximumf %13, %14 : vector<16x128xf32>
    %16 = arith.truncf %15 : vector<16x128xf32> to vector<16x128xbf16>
    %c0_12 = arith.constant 0 : index
    %c0_13 = arith.constant 0 : index
    %17 = vector.load %arg6[%c0_12, %c0_13] : memref<128x16xbf16, #tpu.memory_space<vmem>>, vector<128x16xbf16>
    %cst_14 = arith.constant dense<0.000000e+00> : vector<16x16xf32>
    %18 = tpu.matmul %16, %17, %cst_14 {dimension_numbers = #tpu.dot_dimension_numbers<[1], [0], [0], [1], [0, 0, 1, 1], [], []>} : vector<16x128xbf16>, vector<128x16xbf16>, vector<16x16xf32> -> vector<16x16xf32>
    %c0_15 = arith.constant 0 : index
    %c0_16 = arith.constant 0 : index
    %19 = vector.load %arg7[%c0_15, %c0_16] : memref<1x16xf32, #tpu.memory_space<vmem>>, vector<1x16xf32>
    %20 = vector.broadcast %19 : vector<1x16xf32> to vector<16x16xf32>
    %21 = arith.addf %18, %20 : vector<16x16xf32>
    %c0_17 = arith.constant 0 : index
    %c0_18 = arith.constant 0 : index
    %22 = vector.load %arg8[%c0_17, %c0_18] : memref<16x16xf32, #tpu.memory_space<vmem>>, vector<16x16xf32>
    tpu.vector_store %arg8[%c0_17, %c0_18], %21 {strides = array<i32>} : memref<16x16xf32, #tpu.memory_space<vmem>>, vector<16x16xf32>,
    return
  }
  func.func @transform_0(%arg0: i32) -> (i32, i32) {
    %c0_i32 = arith.constant 0 : i32
    %c0_i32_0 = arith.constant 0 : i32
    return %arg0, %c0_i32 : i32, i32
  }
  func.func @transform_1(%arg0: i32) -> (i32, i32) {
    %c0_i32 = arith.constant 0 : i32
    %c0_i32_0 = arith.constant 0 : i32
    %c0_i32_1 = arith.constant 0 : i32
    return %c0_i32, %c0_i32_0 : i32, i32
  }
  func.func @transform_2(%arg0: i32) -> (i32, i32) {
    %c0_i32 = arith.constant 0 : i32
    %c0_i32_0 = arith.constant 0 : i32
    %c0_i32_1 = arith.constant 0 : i32
    return %c0_i32, %c0_i32_0 : i32, i32
  }
  func.func @transform_3(%arg0: i32) -> (i32, i32) {
    %c0_i32 = arith.constant 0 : i32
    %c0_i32_0 = arith.constant 0 : i32
    %c0_i32_1 = arith.constant 0 : i32
    return %c0_i32, %c0_i32_0 : i32, i32
  }
  func.func @transform_4(%arg0: i32) -> (i32, i32) {
    %c0_i32 = arith.constant 0 : i32
    %c0_i32_0 = arith.constant 0 : i32
    %c0_i32_1 = arith.constant 0 : i32
    return %c0_i32, %c0_i32_0 : i32, i32
  }
  func.func @transform_5(%arg0: i32) -> (i32, i32) {
    %c0_i32 = arith.constant 0 : i32
    %c0_i32_0 = arith.constant 0 : i32
    %c0_i32_1 = arith.constant 0 : i32
    return %c0_i32, %c0_i32_0 : i32, i32
  }
  func.func @transform_6(%arg0: i32) -> (i32, i32) {
    %c0_i32 = arith.constant 0 : i32
    %c0_i32_0 = arith.constant 0 : i32
    %c0_i32_1 = arith.constant 0 : i32
    return %c0_i32, %c0_i32_0 : i32, i32
  }
  func.func @transform_7(%arg0: i32) -> (i32, i32) {
    %c0_i32 = arith.constant 0 : i32
    %c0_i32_0 = arith.constant 0 : i32
    return %arg0, %c0_i32 : i32, i32
  }
}

</mosaic_0001>

<llo_original>
// kernel: _mlp_forward_folded.1
$region0: #{_mlp_forward_folded.1}
  #allocation0 [shape = 'u32[]', space=smem, size = 0x4, offset = 0x4, fixed_abs, tag = 'smem constant byte address 0x4 - core index']
  #allocation1 [shape = 'u32[72,128]{1,0:T(1,128)}', space=vmem, size = 0x9000, scoped, tag = 'internal scratch']
  %s0 = inlined_call_operand.vmem [shape: bf16[1,104], index: 0, kind: input, shape index: {}]
  %s1 = inlined_call_operand.hbm [shape: bf16[104,256], index: 1, kind: input, shape index: {}]
  %s2 = inlined_call_operand.vmem [shape: f32[1,256], index: 2, kind: input, shape index: {}]
  %s3 = inlined_call_operand.hbm [shape: bf16[256,128], index: 3, kind: input, shape index: {}]
  %s4 = inlined_call_operand.vmem [shape: f32[1,128], index: 4, kind: input, shape index: {}]
  %s5 = inlined_call_operand.vmem [shape: bf16[128,16], index: 5, kind: input, shape index: {}]
  %s6 = inlined_call_operand.vmem [shape: f32[1,16], index: 6, kind: input, shape index: {}]
  %s7 = inlined_call_operand.vmem [shape: f32[1,16], index: 7, kind: output, shape index: {}]
  %s8 = sld [smem:[#allocation0]]
  $region76: #{_mlp_forward_folded.1} parent=0
    _
  %s10 = ssub.s32 1, %s8
  %s11 = scalar_select 0, %s10, %s8
  $region1: #{_mlp_forward_folded.1} parent=0
    #allocation2 [shape = 'u8[53248]{0}', space=vmem, size = 0xd000, scoped, tag = 'input window, operand 1, single buffered']
    #allocation3 [shape = 's32[1]{0}', space=sflag, size = 0x4, scoped, tag = 'scoped memory for _mlp_forward_folded.1']
    #allocation4 [shape = 'u8[65536]{0}', space=vmem, size = 0x10000, scoped, tag = 'input window, operand 3, single buffered']
    #allocation5 [shape = 's32[1]{0}', space=sflag, size = 0x4, scoped, tag = 'scoped memory for _mlp_forward_folded.1']
    #allocation6 [shape = 'u8[8192]{0}', space=vmem, size = 0x2000, scoped, tag = 'output window, operand 0, single buffered']
    %12 = vsyncpa [#allocation3], 0
    %13 = vsyncpa [#allocation5], 0
    // Predicated region
    $region2: #{_mlp_forward_folded.1} parent=1 // pred_check
      _
    $region3: #{_mlp_forward_folded.1} parent=1 // pred_check_branch
      %15 = sbr.rel (0) target = $region5
    $region4: #{_mlp_forward_folded.1} parent=1 // pred_region
      _
    $region5: #{_mlp_forward_folded.1} parent=1 // pred_fallthru
      _
    // Predicated region
    $region6: #{_mlp_forward_folded.1} parent=1 // pred_check
      _
    $region7: #{_mlp_forward_folded.1} parent=1 // pred_check_branch
      %17 = sbr.rel (0) target = $region9
    $region8: #{_mlp_forward_folded.1} parent=1 // pred_region
      %19 = vsyncadd [#allocation3], 0
      %s20 = sshll.u32 %s1, 4
      %s21 = int_to_ptr.hbm [resolvable:$true] %s20
      %s22 = sshll.u32 [#allocation2], 4
      %s23 = int_to_ptr.vmem [resolvable:$true] %s22
      %28 = dma.hbm_to_vmem [thread:$0]  %s21, 1664, %s23, [#allocation3], 128, 128, 8
    $region9: #{_mlp_forward_folded.1} parent=1 // pred_fallthru
      _
    // Predicated region
    $region10: #{_mlp_forward_folded.1} parent=1 // pred_check
      _
    $region11: #{_mlp_forward_folded.1} parent=1 // pred_check_branch
      %30 = sbr.rel (0) target = $region13
    $region12: #{_mlp_forward_folded.1} parent=1 // pred_region
      _
    $region13: #{_mlp_forward_folded.1} parent=1 // pred_fallthru
      _
    // Predicated region
    $region14: #{_mlp_forward_folded.1} parent=1 // pred_check
      _
    $region15: #{_mlp_forward_folded.1} parent=1 // pred_check_branch
      %32 = sbr.rel (0) target = $region17
    $region16: #{_mlp_forward_folded.1} parent=1 // pred_region
      %34 = vsyncadd [#allocation5], 0
      %s35 = sshll.u32 %s3, 4
      %s36 = int_to_ptr.hbm [resolvable:$true] %s35
      %s37 = sshll.u32 [#allocation4], 4
      %s38 = int_to_ptr.vmem [resolvable:$true] %s37
      %43 = dma.hbm_to_vmem [thread:$0]  %s36, 2048, %s38, [#allocation5], 64, 64, 4
    $region17: #{_mlp_forward_folded.1} parent=1 // pred_fallthru
      _
    // Predicated region
    $region18: #{_mlp_forward_folded.1} parent=1 // pred_check
      _
    $region19: #{_mlp_forward_folded.1} parent=1 // pred_check_branch
      %45 = sbr.rel (0) target = $region21
    $region20: #{_mlp_forward_folded.1} parent=1 // pred_region
      _
    $region21: #{_mlp_forward_folded.1} parent=1 // pred_fallthru
      _
    // Predicated region
    $region22: #{_mlp_forward_folded.1} parent=1 // pred_check
      _
    $region23: #{_mlp_forward_folded.1} parent=1 // pred_check_branch
      %47 = sbr.rel (0) target = $region25
    $region24: #{_mlp_forward_folded.1} parent=1 // pred_region
      _
    $region25: #{_mlp_forward_folded.1} parent=1 // pred_fallthru
      _
    // Predicated region
    $region26: #{_mlp_forward_folded.1} parent=1 // pred_check
      _
    $region27: #{_mlp_forward_folded.1} parent=1 // pred_check_branch
      %49 = sbr.rel (0) target = $region29
    $region28: #{_mlp_forward_folded.1} parent=1 // pred_region
      _
    $region29: #{_mlp_forward_folded.1} parent=1 // pred_fallthru
      _
    // Predicated region
    $region30: #{_mlp_forward_folded.1} parent=1 // pred_check
      _
    $region31: #{_mlp_forward_folded.1} parent=1 // pred_check_branch
      %51 = sbr.rel (0) target = $region33
    $region32: #{_mlp_forward_folded.1} parent=1 // pred_region
      %53 = dma.done [#allocation3], 1664
    $region33: #{_mlp_forward_folded.1} parent=1 // pred_fallthru
      _
    // Predicated region
    $region34: #{_mlp_forward_folded.1} parent=1 // pred_check
      _
    $region35: #{_mlp_forward_folded.1} parent=1 // pred_check_branch
      %55 = sbr.rel (0) target = $region37
    $region36: #{_mlp_forward_folded.1} parent=1 // pred_region
      %57 = dma.done [#allocation5], 2048
    $region37: #{_mlp_forward_folded.1} parent=1 // pred_fallthru
      _
    %v59 = vld [vmem:[%s0] sm:$0x1]
    %v60 = vld [vmem:[%s0 + $0x1] sm:$0x1]
    %v61 = vld [vmem:[%s0 + $0x2] sm:$0x1]
    %v62 = vld [vmem:[%s0 + $0x3] sm:$0x1]
    %v63 = vld [vmem:[%s0 + $0x4] sm:$0x1]
    %v64 = vld [vmem:[%s0 + $0x5] sm:$0x1]
    %v65 = vld [vmem:[%s0 + $0x6] sm:$0x1]
    %v66 = vld [vmem:[%s0 + $0x7] sm:$0x1]
    %v67 = vld [vmem:[#allocation2] sm:$0xff]
    %v68 = vld [vmem:[#allocation2 + $0x8] sm:$0xff]
    %v69 = vld [vmem:[#allocation2 + $0x10] sm:$0xff]
    %v70 = vld [vmem:[#allocation2 + $0x18] sm:$0xff]
    %v71 = vld [vmem:[#allocation2 + $0x20] sm:$0xff]
    %v72 = vld [vmem:[#allocation2 + $0x28] sm:$0xff]
    %v73 = vld [vmem:[#allocation2 + $0x30] sm:$0xff]
    %v74 = vld [vmem:[#allocation2 + $0x38] sm:$0xff]
    %v75 = vld [vmem:[#allocation2 + $0x40] sm:$0xff]
    %v76 = vld [vmem:[#allocation2 + $0x48] sm:$0xff]
    %v77 = vld [vmem:[#allocation2 + $0x50] sm:$0xff]
    %v78 = vld [vmem:[#allocation2 + $0x58] sm:$0xff]
    %v79 = vld [vmem:[#allocation2 + $0x60] sm:$0xff]
    %v80 = vld [vmem:[%s2] sm:$0x3]
    %v82 = vperm.slane %v80, 0
    %v83 = vperm.slane %v80, 1
    %87 = vst [vmem:[#allocation1] ss:$9 sm:$0xff] %v59
    %s89 = scalar_lea.vmem [#allocation1], 1
    %90 = vst [vmem:[%s89] ss:$9 sm:$0xff] %v60
    %s92 = scalar_lea.vmem [#allocation1], 2
    %93 = vst [vmem:[%s92] ss:$9 sm:$0xff] %v61
    %s95 = scalar_lea.vmem [#allocation1], 3
    %96 = vst [vmem:[%s95] ss:$9 sm:$0xff] %v62
    %s98 = scalar_lea.vmem [#allocation1], 4
    %99 = vst [vmem:[%s98] ss:$9 sm:$0xff] %v63
    %s101 = scalar_lea.vmem [#allocation1], 5
    %102 = vst [vmem:[%s101] ss:$9 sm:$0xff] %v64
    %s104 = scalar_lea.vmem [#allocation1], 6
    %105 = vst [vmem:[%s104] ss:$9 sm:$0xff] %v65
    %s107 = scalar_lea.vmem [#allocation1], 7
    %108 = vst [vmem:[%s107] ss:$9 sm:$0xff] %v66
    %v109 = vld [vmem:[#allocation1] sm:$0xff]
    %v123 = vunpack.c.l.b16 %v67
    %v124 = vunpack.c.h.b16 %v67
    %v125 = vunpack.c.l.b16 %v68
    %v126 = vunpack.c.h.b16 %v68
    %v127 = vunpack.c.l.b16 %v69
    %v128 = vunpack.c.h.b16 %v69
    %v129 = vunpack.c.l.b16 %v70
    %v130 = vunpack.c.h.b16 %v70
    %v131 = vunpack.c.l.b16 %v71
    %v132 = vunpack.c.h.b16 %v71
    %v133 = vunpack.c.l.b16 %v72
    %v134 = vunpack.c.h.b16 %v72
    %v135 = vunpack.c.l.b16 %v73
    %v136 = vunpack.c.h.b16 %v73
    %v137 = vunpack.c.l.b16 %v74
    %v138 = vunpack.c.h.b16 %v74
    %v139 = vunpack.c.l.b16 %v75
    %v140 = vunpack.c.h.b16 %v75
    %v141 = vunpack.c.l.b16 %v76
    %v142 = vunpack.c.h.b16 %v76
    %v143 = vunpack.c.l.b16 %v77
    %v144 = vunpack.c.h.b16 %v77
    %v145 = vunpack.c.l.b16 %v78
    %v146 = vunpack.c.h.b16 %v78
    %v147 = vunpack.c.l.b16 %v79
    %v148 = vunpack.c.h.b16 %v79
    %v149 = vpack.c.b16 %v125, %v123
    %v150 = vpack.c.b16 %v126, %v124
    %v151 = vpack.c.b16 %v129, %v127
    %v152 = vpack.c.b16 %v130, %v128
    %v153 = vpack.c.b16 %v133, %v131
    %v154 = vpack.c.b16 %v134, %v132
    %v155 = vpack.c.b16 %v137, %v135
    %v156 = vpack.c.b16 %v138, %v136
    %v157 = vpack.c.b16 %v141, %v139
    %v158 = vpack.c.b16 %v142, %v140
    %v159 = vpack.c.b16 %v145, %v143
    %v160 = vpack.c.b16 %v146, %v144
    %v161 = vpack.c.b16 %v147, %v147
    %v162 = vpack.c.b16 %v148, %v148
    %vm175 = vcmask 850944
    %v176 = vsel %vm175, %v109, 0
    %vm178 = vcmask 1043456
    %v180 = vsel %vm178, %v161, 0
    %v183 = vsel %vm178, %v162, 0
    %185 = vmatpush.bf16.msra.mxu0 0
    %186 = vmatpush.bf16.msra.mxu0 %v180
    %187 = vmatpush.bf16.msra.mxu0 %v159
    %188 = vmatpush.bf16.msra.mxu0 %v157
    %189 = vmatpush.bf16.msra.mxu0 %v155
    %190 = vmatpush.bf16.msra.mxu0 %v153
    %191 = vmatpush.bf16.msra.mxu0 %v151
    %192 = vmatpush.bf16.msra.mxu0 %v149
    %193 = vmatmul.bf16.gmra.mxu0 %v176
    %v194 = vpop.f32.mrf.mxu0
    %v195 = vadd.f32 %v82, %v194
    %v196 = vpop.f32.mrf.mxu0
    %v197 = vadd.f32 %v82, %v196
    %198 = vdwg.mxu0
    %199 = vmatpush.bf16.msra.mxu0 0
    %200 = vmatpush.bf16.msra.mxu0 %v183
    %201 = vmatpush.bf16.msra.mxu0 %v160
    %202 = vmatpush.bf16.msra.mxu0 %v158
    %203 = vmatpush.bf16.msra.mxu0 %v156
    %204 = vmatpush.bf16.msra.mxu0 %v154
    %205 = vmatpush.bf16.msra.mxu0 %v152
    %206 = vmatpush.bf16.msra.mxu0 %v150
    %207 = vmatmul.bf16.gmra.mxu0 %v176
    %v208 = vpop.f32.mrf.mxu0
    %v209 = vadd.f32 %v83, %v208
    %v210 = vpop.f32.mrf.mxu0
    %v211 = vadd.f32 %v83, %v210
    %212 = vdwg.mxu0
    %v213 = vmax.f32 %v195, 0.0
    %v214 = vmax.f32 %v209, 0.0
    %v215 = vmax.f32 %v197, 0.0
    %v216 = vmax.f32 %v211, 0.0
    %v217 = vpack.c.bf16 %v215, %v213
    %v218 = vpack.c.bf16 %v216, %v214
    %v219 = vld [vmem:[#allocation4] sm:$0xf]
    %v220 = vld [vmem:[#allocation4 + $0x4] sm:$0xf]
    %v221 = vld [vmem:[#allocation4 + $0x8] sm:$0xf]
    %v222 = vld [vmem:[#allocation4 + $0xc] sm:$0xf]
    %v223 = vld [vmem:[#allocation4 + $0x10] sm:$0xf]
    %v224 = vld [vmem:[#allocation4 + $0x14] sm:$0xf]
    %v225 = vld [vmem:[#allocation4 + $0x18] sm:$0xf]
    %v226 = vld [vmem:[#allocation4 + $0x1c] sm:$0xf]
    %v227 = vld [vmem:[#allocation4 + $0x20] sm:$0xf]
    %v228 = vld [vmem:[#allocation4 + $0x24] sm:$0xf]
    %v229 = vld [vmem:[#allocation4 + $0x28] sm:$0xf]
    %v230 = vld [vmem:[#allocation4 + $0x2c] sm:$0xf]
    %v231 = vld [vmem:[#allocation4 + $0x30] sm:$0xf]
    %v232 = vld [vmem:[#allocation4 + $0x34] sm:$0xf]
    %v233 = vld [vmem:[#allocation4 + $0x38] sm:$0xf]
    %v234 = vld [vmem:[#allocation4 + $0x3c] sm:$0xf]
    %v235 = vld [vmem:[#allocation4 + $0x40] sm:$0xf]
    %v236 = vld [vmem:[#allocation4 + $0x44] sm:$0xf]
    %v237 = vld [vmem:[#allocation4 + $0x48] sm:$0xf]
    %v238 = vld [vmem:[#allocation4 + $0x4c] sm:$0xf]
    %v239 = vld [vmem:[#allocation4 + $0x50] sm:$0xf]
    %v240 = vld [vmem:[#allocation4 + $0x54] sm:$0xf]
    %v241 = vld [vmem:[#allocation4 + $0x58] sm:$0xf]
    %v242 = vld [vmem:[#allocation4 + $0x5c] sm:$0xf]
    %v243 = vld [vmem:[#allocation4 + $0x60] sm:$0xf]
    %v244 = vld [vmem:[#allocation4 + $0x64] sm:$0xf]
    %v245 = vld [vmem:[#allocation4 + $0x68] sm:$0xf]
    %v246 = vld [vmem:[#allocation4 + $0x6c] sm:$0xf]
    %v247 = vld [vmem:[#allocation4 + $0x70] sm:$0xf]
    %v248 = vld [vmem:[#allocation4 + $0x74] sm:$0xf]
    %v249 = vld [vmem:[#allocation4 + $0x78] sm:$0xf]
    %v250 = vld [vmem:[#allocation4 + $0x7c] sm:$0xf]
    %v251 = vld [vmem:[%s4] sm:$0x1]
    %v253 = vperm.slane %v251, 0
    %v287 = vunpack.c.l.b16 %v219
    %v288 = vunpack.c.l.b16 %v220
    %v289 = vunpack.c.l.b16 %v221
    %v290 = vunpack.c.l.b16 %v222
    %v291 = vunpack.c.l.b16 %v223
    %v292 = vunpack.c.l.b16 %v224
    %v293 = vunpack.c.l.b16 %v225
    %v294 = vunpack.c.l.b16 %v226
    %v295 = vunpack.c.l.b16 %v227
    %v296 = vunpack.c.l.b16 %v228
    %v297 = vunpack.c.l.b16 %v229
    %v298 = vunpack.c.l.b16 %v230
    %v299 = vunpack.c.l.b16 %v231
    %v300 = vunpack.c.l.b16 %v232
    %v301 = vunpack.c.l.b16 %v233
    %v302 = vunpack.c.l.b16 %v234
    %v303 = vunpack.c.l.b16 %v235
    %v304 = vunpack.c.l.b16 %v236
    %v305 = vunpack.c.l.b16 %v237
    %v306 = vunpack.c.l.b16 %v238
    %v307 = vunpack.c.l.b16 %v239
    %v308 = vunpack.c.l.b16 %v240
    %v309 = vunpack.c.l.b16 %v241
    %v310 = vunpack.c.l.b16 %v242
    %v311 = vunpack.c.l.b16 %v243
    %v312 = vunpack.c.l.b16 %v244
    %v313 = vunpack.c.l.b16 %v245
    %v314 = vunpack.c.l.b16 %v246
    %v315 = vunpack.c.l.b16 %v247
    %v316 = vunpack.c.l.b16 %v248
    %v317 = vunpack.c.l.b16 %v249
    %v318 = vunpack.c.l.b16 %v250
    %v319 = vpack.c.b16 %v288, %v287
    %v320 = vpack.c.b16 %v290, %v289
    %v321 = vpack.c.b16 %v292, %v291
    %v322 = vpack.c.b16 %v294, %v293
    %v323 = vpack.c.b16 %v296, %v295
    %v324 = vpack.c.b16 %v298, %v297
    %v325 = vpack.c.b16 %v300, %v299
    %v326 = vpack.c.b16 %v302, %v301
    %v327 = vpack.c.b16 %v304, %v303
    %v328 = vpack.c.b16 %v306, %v305
    %v329 = vpack.c.b16 %v308, %v307
    %v330 = vpack.c.b16 %v310, %v309
    %v331 = vpack.c.b16 %v312, %v311
    %v332 = vpack.c.b16 %v314, %v313
    %v333 = vpack.c.b16 %v316, %v315
    %v334 = vpack.c.b16 %v318, %v317
    %351 = vmatpush.bf16.msra.mxu0 %v326
    %352 = vmatpush.bf16.msra.mxu0 %v325
    %353 = vmatpush.bf16.msra.mxu0 %v324
    %354 = vmatpush.bf16.msra.mxu0 %v323
    %355 = vmatpush.bf16.msra.mxu0 %v322
    %356 = vmatpush.bf16.msra.mxu0 %v321
    %357 = vmatpush.bf16.msra.mxu0 %v320
    %358 = vmatpush.bf16.msra.mxu0 %v319
    %359 = vmatmul.bf16.gmra.mxu0 %v217
    %v360 = vpop.f32.mrf.mxu0
    %v361 = vadd.f32 %v253, %v360
    %v362 = vpop.f32.mrf.mxu0
    %v363 = vadd.f32 %v253, %v362
    %364 = vdwg.mxu0
    %365 = vmatpush.bf16.msra.mxu0 %v334
    %366 = vmatpush.bf16.msra.mxu0 %v333
    %367 = vmatpush.bf16.msra.mxu0 %v332
    %368 = vmatpush.bf16.msra.mxu0 %v331
    %369 = vmatpush.bf16.msra.mxu0 %v330
    %370 = vmatpush.bf16.msra.mxu0 %v329
    %371 = vmatpush.bf16.msra.mxu0 %v328
    %372 = vmatpush.bf16.msra.mxu0 %v327
    %373 = vmatmul.bf16.gmra.mxu0 %v218
    %v374 = vpop.f32.mrf.mxu0
    %v375 = vadd.f32 %v361, %v374
    %v376 = vpop.f32.mrf.mxu0
    %v377 = vadd.f32 %v363, %v376
    %378 = vdwg.mxu0
    %v379 = vmax.f32 %v375, 0.0
    %v380 = vmax.f32 %v377, 0.0
    %v381 = vpack.c.bf16 %v380, %v379
    %v382 = vld [vmem:[%s5] sm:$0xf]
    %v383 = vld [vmem:[%s5 + $0x4] sm:$0xf]
    %v384 = vld [vmem:[%s5 + $0x8] sm:$0xf]
    %v385 = vld [vmem:[%s5 + $0xc] sm:$0xf]
    %v386 = vld [vmem:[%s5 + $0x10] sm:$0xf]
    %v387 = vld [vmem:[%s5 + $0x14] sm:$0xf]
    %v388 = vld [vmem:[%s5 + $0x18] sm:$0xf]
    %v389 = vld [vmem:[%s5 + $0x1c] sm:$0xf]
    %v390 = vld [vmem:[%s5 + $0x20] sm:$0xf]
    %v391 = vld [vmem:[%s5 + $0x24] sm:$0xf]
    %v392 = vld [vmem:[%s5 + $0x28] sm:$0xf]
    %v393 = vld [vmem:[%s5 + $0x2c] sm:$0xf]
    %v394 = vld [vmem:[%s5 + $0x30] sm:$0xf]
    %v395 = vld [vmem:[%s5 + $0x34] sm:$0xf]
    %v396 = vld [vmem:[%s5 + $0x38] sm:$0xf]
    %v397 = vld [vmem:[%s5 + $0x3c] sm:$0xf]
    %v398 = vld [vmem:[%s6] sm:$0x1]
    %v400 = vperm.slane %v398, 0
    %v418 = vunpack.c.l.b16 %v382
    %v419 = vunpack.c.l.b16 %v383
    %v420 = vunpack.c.l.b16 %v384
    %v421 = vunpack.c.l.b16 %v385
    %v422 = vunpack.c.l.b16 %v386
    %v423 = vunpack.c.l.b16 %v387
    %v424 = vunpack.c.l.b16 %v388
    %v425 = vunpack.c.l.b16 %v389
    %v426 = vunpack.c.l.b16 %v390
    %v427 = vunpack.c.l.b16 %v391
    %v428 = vunpack.c.l.b16 %v392
    %v429 = vunpack.c.l.b16 %v393
    %v430 = vunpack.c.l.b16 %v394
    %v431 = vunpack.c.l.b16 %v395
    %v432 = vunpack.c.l.b16 %v396
    %v433 = vunpack.c.l.b16 %v397
    %v434 = vpack.c.b16 %v419, %v418
    %v435 = vpack.c.b16 %v421, %v420
    %v436 = vpack.c.b16 %v423, %v422
    %v437 = vpack.c.b16 %v425, %v424
    %v438 = vpack.c.b16 %v427, %v426
    %v439 = vpack.c.b16 %v429, %v428
    %v440 = vpack.c.b16 %v431, %v430
    %v441 = vpack.c.b16 %v433, %v432
    %450 = vmatpush.bf16.msra.mxu0 %v441
    %451 = vmatpush.bf16.msra.mxu0 %v440
    %452 = vmatpush.bf16.msra.mxu0 %v439
    %453 = vmatpush.bf16.msra.mxu0 %v438
    %454 = vmatpush.bf16.msra.mxu0 %v437
    %455 = vmatpush.bf16.msra.mxu0 %v436
    %456 = vmatpush.bf16.msra.mxu0 %v435
    %457 = vmatpush.bf16.msra.mxu0 %v434
    %458 = vmatmul.bf16.gmra.mxu0 %v381
    %v459 = vpop.f32.mrf.mxu0
    %v460 = vadd.f32 %v400, %v459
    %v461 = vpop.f32.mrf.mxu0
    %v462 = vadd.f32 %v400, %v461
    %463 = vdwg.mxu0
    %vm464 = vcmask 130048
    %465 = vst.msk [vmem:[#allocation6] sm:$0xff] %vm464, %v460
    %466 = vst.msk [vmem:[#allocation6 + $0x8] sm:$0xff] %vm464, %v462
    // Predicated region
    $region38: #{_mlp_forward_folded.1} parent=1 // pred_check
      _
    $region39: #{_mlp_forward_folded.1} parent=1 // pred_check_branch
      %468 = sbr.rel (0) target = $region41
    $region40: #{_mlp_forward_folded.1} parent=1 // pred_region
      // Predicated region
      $region42: #{_mlp_forward_folded.1} parent=40 // pred_check
        _
      $region43: #{_mlp_forward_folded.1} parent=40 // pred_check_branch
        %470 = sbr.rel (0) target = $region45
      $region44: #{_mlp_forward_folded.1} parent=40 // pred_region
        // Predicated region
        $region46: #{_mlp_forward_folded.1} parent=44 // pred_check
          _
        $region47: #{_mlp_forward_folded.1} parent=44 // pred_check_branch
          %472 = sbr.rel target = $region49
        $region48: #{_mlp_forward_folded.1} parent=44 // pred_region
          // Predicated region
          $region61: #{_mlp_forward_folded.1} parent=48 // pred_check
            _
          $region62: #{_mlp_forward_folded.1} parent=48 // pred_check_branch
            %488 = sbr.rel (0) target = $region64
          $region63: #{_mlp_forward_folded.1} parent=48 // pred_region
            %s490 = ssub.s32 2, 1
            loop: start=0, step=1, limit=1
            $region65: #{_mlp_forward_folded.1} parent=63 // loop_pre_header
              _
            $region66: #{_mlp_forward_folded.1} parent=63 // loop_header
              %s492 = sphi 0, %s496
              %p493 = scmp.ge.s32.totalorder %s492, 1
              %s497 = sphi [#allocation6], [#allocation6]
              %s498 = sphi %s7, %s7
            $region67: #{_mlp_forward_folded.1} parent=63 // loop_header_branch
              %495 = sbr.rel (%p493) target = $region71
            $region68: #{_mlp_forward_folded.1} parent=63 // loop_body
              %v499 = vld [vmem:[%s497] sm:%s490]
              %500 = vst [vmem:[%s498] sm:%s490] %v499
            $region69: #{_mlp_forward_folded.1} parent=63 // loop_footer
              %s496 = sadd.s32 1, %s492
            $region70: #{_mlp_forward_folded.1} parent=63 // loop_footer_branch
              %491 = sbr.rel target = $region66
            $region71: #{_mlp_forward_folded.1} parent=63 // loop_exit
              _
          $region64: #{_mlp_forward_folded.1} parent=48 // pred_fallthru
            _
        $region49: #{_mlp_forward_folded.1} parent=44 // pred_fallthru
          _
        // Predicated region
        $region50: #{_mlp_forward_folded.1} parent=44 // pred_check
          _
        $region51: #{_mlp_forward_folded.1} parent=44 // pred_check_branch
          %474 = sbr.rel (0) target = $region53
        $region52: #{_mlp_forward_folded.1} parent=44 // pred_region
          %s476 = ssub.s32 2, 1
          loop: start=0, step=1, limit=1
          $region54: #{_mlp_forward_folded.1} parent=52 // loop_pre_header
            _
          $region55: #{_mlp_forward_folded.1} parent=52 // loop_header
            %s478 = sphi 0, %s482
            %p479 = scmp.ge.s32.totalorder %s478, 1
            %s483 = sphi [#allocation6], [#allocation6]
            %s484 = sphi %s7, %s7
          $region56: #{_mlp_forward_folded.1} parent=52 // loop_header_branch
            %481 = sbr.rel (%p479) target = $region60
          $region57: #{_mlp_forward_folded.1} parent=52 // loop_body
            %v485 = vld [vmem:[%s483] sm:%s476]
            %486 = vst [vmem:[%s484] sm:%s476] %v485
          $region58: #{_mlp_forward_folded.1} parent=52 // loop_footer
            %s482 = sadd.s32 1, %s478
          $region59: #{_mlp_forward_folded.1} parent=52 // loop_footer_branch
            %477 = sbr.rel target = $region55
          $region60: #{_mlp_forward_folded.1} parent=52 // loop_exit
            _
        $region53: #{_mlp_forward_folded.1} parent=44 // pred_fallthru
          _
      $region45: #{_mlp_forward_folded.1} parent=40 // pred_fallthru
        _
      %501 = vnop
    $region41: #{_mlp_forward_folded.1} parent=1 // pred_fallthru
      _
    // Predicated region
    $region72: #{_mlp_forward_folded.1} parent=1 // pred_check
      _
    $region73: #{_mlp_forward_folded.1} parent=1 // pred_check_branch
      %503 = sbr.rel (0) target = $region75
    $region74: #{_mlp_forward_folded.1} parent=1 // pred_region
      _
    $region75: #{_mlp_forward_folded.1} parent=1 // pred_fallthru
      _
    %504 = vsyncpa [#allocation3], 1
    %505 = vsyncpa [#allocation5], 1

</llo_original>
